<compile_context>
chip_gen: v6e
topology: v6e:2x2x1
jax: 0.10.0
libtpu: 0.0.40
codegen_flags: <defaults>
</compile_context>

<pallas_src>
import functools

import jax
import jax.numpy as jnp
from jax.experimental import pallas as pl
from jax.experimental.pallas import tpu as pltpu

INPUT_SIZE = 68
HIDDEN_SIZES = [512, 248, 124, 64]
OUT_SIZE = 1
LANE = 128
SUBLANE = 8

DIMS = [INPUT_SIZE] + HIDDEN_SIZES + [OUT_SIZE]


def _round_up(x, m):
    return ((x + m - 1) // m) * m


# Lane-padded feature dims: 128, 512, 256, 128, 128, 128.
PDIMS = [_round_up(d, LANE) for d in DIMS]


def _mlp_kernel(x_ref,
                w0_ref, b0_ref,
                w1_ref, b1_ref,
                w2_ref, b2_ref,
                w3_ref, b3_ref,
                w4_ref, b4_ref,
                o_ref):
    """Fused MLP: bf16 MXU operands, f32 accumulation, narrow (tile, 1) store."""
    h = x_ref[...]  # bf16 (tile, 128)

    # Hidden layers: Linear (MXU, f32 acc) + f32 bias + ReLU, repack to bf16.
    for w_ref, b_ref in ((w0_ref, b0_ref), (w1_ref, b1_ref),
                         (w2_ref, b2_ref), (w3_ref, b3_ref)):
        acc = jnp.dot(h, w_ref[...], preferred_element_type=jnp.float32)
        h = jnp.maximum(acc + b_ref[...], 0.0).astype(jnp.bfloat16)

    # Output layer: padded 128x128 matmul (only column 0 is meaningful; padded
    # weight/bias columns are exact zeros).  Store only column 0.
    out = jnp.dot(h, w4_ref[...], preferred_element_type=jnp.float32) + b4_ref[...]
    o_ref[...] = out[:, :OUT_SIZE]


def prepare_params(params):
    """One-time: pad every (W, b) to lane multiples and cast W to bf16.

    params: list of (W, b) with W shaped (in, out) (PyTorch W.T), b (1, out).
    Returns the flat [w0, b0, w1, b1, ...] list the kernel consumes.
    """
    flat = []
    for li, (w, b) in enumerate(params):
        d_in, d_out = DIMS[li], DIMS[li + 1]
        p_in, p_out = PDIMS[li], PDIMS[li + 1]
        assert w.shape == (d_in, d_out), w.shape
        assert b.shape == (1, d_out), b.shape
        flat.append(jnp.pad(w, ((0, p_in - d_in), (0, p_out - d_out)))
                    .astype(jnp.bfloat16))
        flat.append(jnp.pad(b, ((0, 0), (0, p_out - d_out))).astype(jnp.float32))
    return flat


def _choose_batch_tile(B, requested):
    """Shrink the tile for small B; keep >=4 grid steps when B allows (v7x)."""
    tile = max(SUBLANE, min(requested, _round_up(B, SUBLANE)))
    if B >= 4 * SUBLANE:
        tile = min(tile, max(SUBLANE, _round_up(-(-B // 4), SUBLANE)))
    return tile


@functools.partial(jax.jit, static_argnames=("batch_tile",))
def hr_predictor_forward(x, flat_params, batch_tile=2048):
    """HRPredictor forward pass via one fused Pallas kernel.

    x:           (B, 68) float32
    flat_params: output of prepare_params()
    returns:     (B, 1) float32
    """
    B, F = x.shape
    if F != INPUT_SIZE:
        raise ValueError(f"expected {INPUT_SIZE} input features, got {F}")

    tile = _choose_batch_tile(B, batch_tile)
    B_pad = _round_up(B, tile)

    # Per-call work: pad/cast only the activations (params are pre-prepared).
    x_p = jnp.pad(x.astype(jnp.bfloat16), ((0, B_pad - B), (0, PDIMS[0] - F)))

    in_specs = [pl.BlockSpec((tile, PDIMS[0]), lambda i: (i, 0))]
    for li in range(len(DIMS) - 1):
        p_in, p_out = PDIMS[li], PDIMS[li + 1]
        # Constant index_map: the ~0.5 MB of bf16 params stays VMEM-resident
        # across all batch-grid steps.
        in_specs.append(pl.BlockSpec((p_in, p_out), lambda i: (0, 0)))
        in_specs.append(pl.BlockSpec((1, p_out), lambda i: (0, 0)))

    # Narrow output: (tile, 1) f32 per grid step (last dim == full array dim).
    out_spec = pl.BlockSpec((tile, OUT_SIZE), lambda i: (i, 0))

    flops = 2 * B_pad * sum(PDIMS[i] * PDIMS[i + 1] for i in range(len(PDIMS) - 1))
    bytes_in = x_p.size * 2 + sum(int(p.size) * p.dtype.itemsize for p in flat_params)
    bytes_out = B_pad * OUT_SIZE * 4
    cost = pl.CostEstimate(flops=flops, transcendentals=0,
                           bytes_accessed=bytes_in + bytes_out)

    out = pl.pallas_call(
        _mlp_kernel,
        out_shape=jax.ShapeDtypeStruct((B_pad, OUT_SIZE), jnp.float32),
        grid=(B_pad // tile,),
        in_specs=in_specs,
        out_specs=out_spec,
        compiler_params=pltpu.CompilerParams(
            dimension_semantics=("parallel",),
            vmem_limit_bytes=32 * 1024 * 1024,
        ),
        cost_estimate=cost,
    )(x_p, *flat_params)

    # Strip batch padding (no column padding to strip anymore).
    return out[:B]


def init_params(key):
    """nn.Linear-style init U(-1/sqrt(in), 1/sqrt(in)); W stored as (in, out)."""
    params = []
    for i in range(len(DIMS) - 1):
        d_in, d_out = DIMS[i], DIMS[i + 1]
        key, kw, kb = jax.random.split(key, 3)
        bound = 1.0 / (d_in ** 0.5)
        w = jax.random.uniform(kw, (d_in, d_out), jnp.float32, -bound, bound)
        b = jax.random.uniform(kb, (1, d_out), jnp.float32, -bound, bound)
        params.append((w, b))
    return params


def reference_forward(x, params):
    """Pure-f32 plain-JAX reference (matches the PyTorch module)."""
    h = x
    n = len(params)
    for i, (w, b) in enumerate(params):
        h = h @ w + b
        if i < n - 1:
            h = jnp.maximum(h, 0.0)
    return h


def reference_forward_bf16(x, params):
    """Reference matching the kernel's numerics (bf16 operands, f32 accum)."""
    h = x.astype(jnp.bfloat16).astype(jnp.float32)
    n = len(params)
    for i, (w, b) in enumerate(params):
        h = h @ w.astype(jnp.bfloat16).astype(jnp.float32) + b
        if i < n - 1:
            h = jnp.maximum(h, 0.0).astype(jnp.bfloat16).astype(jnp.float32)
    return h


if __name__ == "__main__":
    key = jax.random.PRNGKey(0)
    key, kx, kx2 = jax.random.split(key, 3)

    params = init_params(key)
    flat_params = prepare_params(params)

    # Small single-tile case (batch pads 4 -> 8, one grid step).
    batch = 4
    x = jax.random.normal(kx, (batch, INPUT_SIZE), jnp.float32)
    out = jax.block_until_ready(hr_predictor_forward(x, flat_params))

    ref_bf16 = reference_forward_bf16(x, params)
    ref_f32 = reference_forward(x, params)
    assert out.shape == (batch, OUT_SIZE), out.shape
    assert jnp.allclose(out, ref_bf16, atol=2e-2, rtol=2e-2), (
        f"max err vs bf16 ref {jnp.max(jnp.abs(out - ref_bf16))}")
    assert jnp.allclose(out, ref_f32, atol=1.5e-1, rtol=1.5e-1), (
        f"max err vs f32 ref {jnp.max(jnp.abs(out - ref_f32))}")

    # Small multi-step-grid case (exercises tile shrink + batch padding).
    batch2 = 40
    x2 = jax.random.normal(kx2, (batch2, INPUT_SIZE), jnp.float32)
    out2 = jax.block_until_ready(hr_predictor_forward(x2, flat_params))
    ref2 = reference_forward_bf16(x2, params)
    assert out2.shape == (batch2, OUT_SIZE), out2.shape
    assert jnp.allclose(out2, ref2, atol=2e-2, rtol=2e-2), (
        f"max err vs bf16 ref {jnp.max(jnp.abs(out2 - ref2))}")

    print("KERNEL_OK")
</pallas_src>

<mosaic_0001>
module attributes {stable_mosaic.version = 11 : i64} {
  func.func @_mlp_kernel(%arg0: i32, %arg1: memref<8x128xbf16, #tpu.memory_space<vmem>>, %arg2: memref<128x512xbf16, #tpu.memory_space<vmem>>, %arg3: memref<1x512xf32, #tpu.memory_space<vmem>>, %arg4: memref<512x256xbf16, #tpu.memory_space<vmem>>, %arg5: memref<1x256xf32, #tpu.memory_space<vmem>>, %arg6: memref<256x128xbf16, #tpu.memory_space<vmem>>, %arg7: memref<1x128xf32, #tpu.memory_space<vmem>>, %arg8: memref<128x128xbf16, #tpu.memory_space<vmem>>, %arg9: memref<1x128xf32, #tpu.memory_space<vmem>>, %arg10: memref<128x128xbf16, #tpu.memory_space<vmem>>, %arg11: memref<1x128xf32, #tpu.memory_space<vmem>>, %arg12: memref<8x1xf32, #tpu.memory_space<vmem>>) attributes {dimension_semantics = [#tpu.dimension_semantics<parallel>], iteration_bounds = array<i64: 1>, scalar_prefetch = 0 : i64, scratch_operands = 0 : i64, tpu.core_type = #tpu.core_type<tc>, window_params = [{transform_indices = @transform_0, window_bounds = array<i64: 8, 128>}, {pipeline_mode = #tpu.pipeline_mode<synchronous>, transform_indices = @transform_1, window_bounds = array<i64: 128, 512>}, {pipeline_mode = #tpu.pipeline_mode<synchronous>, transform_indices = @transform_2, window_bounds = array<i64: 1, 512>}, {pipeline_mode = #tpu.pipeline_mode<synchronous>, transform_indices = @transform_3, window_bounds = array<i64: 512, 256>}, {pipeline_mode = #tpu.pipeline_mode<synchronous>, transform_indices = @transform_4, window_bounds = array<i64: 1, 256>}, {pipeline_mode = #tpu.pipeline_mode<synchronous>, transform_indices = @transform_5, window_bounds = array<i64: 256, 128>}, {pipeline_mode = #tpu.pipeline_mode<synchronous>, transform_indices = @transform_6, window_bounds = array<i64: 1, 128>}, {pipeline_mode = #tpu.pipeline_mode<synchronous>, transform_indices = @transform_7, window_bounds = array<i64: 128, 128>}, {pipeline_mode = #tpu.pipeline_mode<synchronous>, transform_indices = @transform_8, window_bounds = array<i64: 1, 128>}, {pipeline_mode = #tpu.pipeline_mode<synchronous>, transform_indices = @transform_9, window_bounds = array<i64: 128, 128>}, {pipeline_mode = #tpu.pipeline_mode<synchronous>, transform_indices = @transform_10, window_bounds = array<i64: 1, 128>}, {transform_indices = @transform_11, window_bounds = array<i64: 8, 1>}]} {
    %c0 = arith.constant 0 : index
    %c0_0 = arith.constant 0 : index
    %0 = vector.load %arg1[%c0, %c0_0] : memref<8x128xbf16, #tpu.memory_space<vmem>>, vector<8x128xbf16>
    %c0_1 = arith.constant 0 : index
    %c0_2 = arith.constant 0 : index
    %1 = vector.load %arg2[%c0_1, %c0_2] : memref<128x512xbf16, #tpu.memory_space<vmem>>, vector<128x512xbf16>
    %cst = arith.constant dense<0.000000e+00> : vector<8x512xf32>
    %2 = tpu.matmul %0, %1, %cst {dimension_numbers = #tpu.dot_dimension_numbers<[1], [0], [0], [1], [0, 0, 1, 1], [], []>} : vector<8x128xbf16>, vector<128x512xbf16>, vector<8x512xf32> -> vector<8x512xf32>
    %c0_3 = arith.constant 0 : index
    %c0_4 = arith.constant 0 : index
    %3 = vector.load %arg3[%c0_3, %c0_4] : memref<1x512xf32, #tpu.memory_space<vmem>>, vector<1x512xf32>
    %4 = vector.broadcast %3 : vector<1x512xf32> to vector<8x512xf32>
    %5 = arith.addf %2, %4 : vector<8x512xf32>
    %cst_5 = arith.constant 0.000000e+00 : f32
    %6 = vector.broadcast %cst_5 : f32 to vector<8x512xf32>
    %7 = arith.maximumf %5, %6 : vector<8x512xf32>
    %8 = arith.truncf %7 : vector<8x512xf32> to vector<8x512xbf16>
    %c0_6 = arith.constant 0 : index
    %c0_7 = arith.constant 0 : index
    %9 = vector.load %arg4[%c0_6, %c0_7] : memref<512x256xbf16, #tpu.memory_space<vmem>>, vector<512x256xbf16>
    %cst_8 = arith.constant dense<0.000000e+00> : vector<8x256xf32>
    %10 = tpu.matmul %8, %9, %cst_8 {dimension_numbers = #tpu.dot_dimension_numbers<[1], [0], [0], [1], [0, 0, 1, 1], [], []>} : vector<8x512xbf16>, vector<512x256xbf16>, vector<8x256xf32> -> vector<8x256xf32>
    %c0_9 = arith.constant 0 : index
    %c0_10 = arith.constant 0 : index
    %11 = vector.load %arg5[%c0_9, %c0_10] : memref<1x256xf32, #tpu.memory_space<vmem>>, vector<1x256xf32>
    %12 = vector.broadcast %11 : vector<1x256xf32> to vector<8x256xf32>
    %13 = arith.addf %10, %12 : vector<8x256xf32>
    %cst_11 = arith.constant 0.000000e+00 : f32
    %14 = vector.broadcast %cst_11 : f32 to vector<8x256xf32>
    %15 = arith.maximumf %13, %14 : vector<8x256xf32>
    %16 = arith.truncf %15 : vector<8x256xf32> to vector<8x256xbf16>
    %c0_12 = arith.constant 0 : index
    %c0_13 = arith.constant 0 : index
    %17 = vector.load %arg6[%c0_12, %c0_13] : memref<256x128xbf16, #tpu.memory_space<vmem>>, vector<256x128xbf16>
    %cst_14 = arith.constant dense<0.000000e+00> : vector<8x128xf32>
    %18 = tpu.matmul %16, %17, %cst_14 {dimension_numbers = #tpu.dot_dimension_numbers<[1], [0], [0], [1], [0, 0, 1, 1], [], []>} : vector<8x256xbf16>, vector<256x128xbf16>, vector<8x128xf32> -> vector<8x128xf32>
    %c0_15 = arith.constant 0 : index
    %c0_16 = arith.constant 0 : index
    %19 = vector.load %arg7[%c0_15, %c0_16] : memref<1x128xf32, #tpu.memory_space<vmem>>, vector<1x128xf32>
    %20 = vector.broadcast %19 : vector<1x128xf32> to vector<8x128xf32>
    %21 = arith.addf %18, %20 : vector<8x128xf32>
    %cst_17 = arith.constant 0.000000e+00 : f32
    %22 = vector.broadcast %cst_17 : f32 to vector<8x128xf32>
    %23 = arith.maximumf %21, %22 : vector<8x128xf32>
    %24 = arith.truncf %23 : vector<8x128xf32> to vector<8x128xbf16>
    %c0_18 = arith.constant 0 : index
    %c0_19 = arith.constant 0 : index
    %25 = vector.load %arg8[%c0_18, %c0_19] : memref<128x128xbf16, #tpu.memory_space<vmem>>, vector<128x128xbf16>
    %cst_20 = arith.constant dense<0.000000e+00> : vector<8x128xf32>
    %26 = tpu.matmul %24, %25, %cst_20 {dimension_numbers = #tpu.dot_dimension_numbers<[1], [0], [0], [1], [0, 0, 1, 1], [], []>} : vector<8x128xbf16>, vector<128x128xbf16>, vector<8x128xf32> -> vector<8x128xf32>
    %c0_21 = arith.constant 0 : index
    %c0_22 = arith.constant 0 : index
    %27 = vector.load %arg9[%c0_21, %c0_22] : memref<1x128xf32, #tpu.memory_space<vmem>>, vector<1x128xf32>
    %28 = vector.broadcast %27 : vector<1x128xf32> to vector<8x128xf32>
    %29 = arith.addf %26, %28 : vector<8x128xf32>
    %cst_23 = arith.constant 0.000000e+00 : f32
    %30 = vector.broadcast %cst_23 : f32 to vector<8x128xf32>
    %31 = arith.maximumf %29, %30 : vector<8x128xf32>
    %32 = arith.truncf %31 : vector<8x128xf32> to vector<8x128xbf16>
    %c0_24 = arith.constant 0 : index
    %c0_25 = arith.constant 0 : index
    %33 = vector.load %arg10[%c0_24, %c0_25] : memref<128x128xbf16, #tpu.memory_space<vmem>>, vector<128x128xbf16>
    %cst_26 = arith.constant dense<0.000000e+00> : vector<8x128xf32>
    %34 = tpu.matmul %32, %33, %cst_26 {dimension_numbers = #tpu.dot_dimension_numbers<[1], [0], [0], [1], [0, 0, 1, 1], [], []>} : vector<8x128xbf16>, vector<128x128xbf16>, vector<8x128xf32> -> vector<8x128xf32>
    %c0_27 = arith.constant 0 : index
    %c0_28 = arith.constant 0 : index
    %35 = vector.load %arg11[%c0_27, %c0_28] : memref<1x128xf32, #tpu.memory_space<vmem>>, vector<1x128xf32>
    %36 = vector.broadcast %35 : vector<1x128xf32> to vector<8x128xf32>
    %37 = arith.addf %34, %36 : vector<8x128xf32>
    %38 = vector.extract_strided_slice %37 {offsets = [0, 0], sizes = [8, 1], strides = [1, 1]} : vector<8x128xf32> to vector<8x1xf32>
    %c0_29 = arith.constant 0 : index
    %c0_30 = arith.constant 0 : index
    %39 = vector.load %arg12[%c0_29, %c0_30] : memref<8x1xf32, #tpu.memory_space<vmem>>, vector<8x1xf32>
    tpu.vector_store %arg12[%c0_29, %c0_30], %38 {strides = array<i32>} : memref<8x1xf32, #tpu.memory_space<vmem>>, vector<8x1xf32>,
    return
  }
  func.func @transform_0(%arg0: i32) -> (i32, i32) {
    %c0_i32 = arith.constant 0 : i32
    %c0_i32_0 = arith.constant 0 : i32
    return %arg0, %c0_i32 : i32, i32
  }
  func.func @transform_1(%arg0: i32) -> (i32, i32) {
    %c0_i32 = arith.constant 0 : i32
    %c0_i32_0 = arith.constant 0 : i32
    %c0_i32_1 = arith.constant 0 : i32
    return %c0_i32, %c0_i32_0 : i32, i32
  }
  func.func @transform_2(%arg0: i32) -> (i32, i32) {
    %c0_i32 = arith.constant 0 : i32
    %c0_i32_0 = arith.constant 0 : i32
    %c0_i32_1 = arith.constant 0 : i32
    return %c0_i32, %c0_i32_0 : i32, i32
  }
  func.func @transform_3(%arg0: i32) -> (i32, i32) {
    %c0_i32 = arith.constant 0 : i32
    %c0_i32_0 = arith.constant 0 : i32
    %c0_i32_1 = arith.constant 0 : i32
    return %c0_i32, %c0_i32_0 : i32, i32
  }
  func.func @transform_4(%arg0: i32) -> (i32, i32) {
    %c0_i32 = arith.constant 0 : i32
    %c0_i32_0 = arith.constant 0 : i32
    %c0_i32_1 = arith.constant 0 : i32
    return %c0_i32, %c0_i32_0 : i32, i32
  }
  func.func @transform_5(%arg0: i32) -> (i32, i32) {
    %c0_i32 = arith.constant 0 : i32
    %c0_i32_0 = arith.constant 0 : i32
    %c0_i32_1 = arith.constant 0 : i32
    return %c0_i32, %c0_i32_0 : i32, i32
  }
  func.func @transform_6(%arg0: i32) -> (i32, i32) {
    %c0_i32 = arith.constant 0 : i32
    %c0_i32_0 = arith.constant 0 : i32
    %c0_i32_1 = arith.constant 0 : i32
    return %c0_i32, %c0_i32_0 : i32, i32
  }
  func.func @transform_7(%arg0: i32) -> (i32, i32) {
    %c0_i32 = arith.constant 0 : i32
    %c0_i32_0 = arith.constant 0 : i32
    %c0_i32_1 = arith.constant 0 : i32
    return %c0_i32, %c0_i32_0 : i32, i32
  }
  func.func @transform_8(%arg0: i32) -> (i32, i32) {
    %c0_i32 = arith.constant 0 : i32
    %c0_i32_0 = arith.constant 0 : i32
    %c0_i32_1 = arith.constant 0 : i32
    return %c0_i32, %c0_i32_0 : i32, i32
  }
  func.func @transform_9(%arg0: i32) -> (i32, i32) {
    %c0_i32 = arith.constant 0 : i32
    %c0_i32_0 = arith.constant 0 : i32
    %c0_i32_1 = arith.constant 0 : i32
    return %c0_i32, %c0_i32_0 : i32, i32
  }
  func.func @transform_10(%arg0: i32) -> (i32, i32) {
    %c0_i32 = arith.constant 0 : i32
    %c0_i32_0 = arith.constant 0 : i32
    %c0_i32_1 = arith.constant 0 : i32
    return %c0_i32, %c0_i32_0 : i32, i32
  }
  func.func @transform_11(%arg0: i32) -> (i32, i32) {
    %c0_i32 = arith.constant 0 : i32
    %c0_i32_0 = arith.constant 0 : i32
    return %arg0, %c0_i32 : i32, i32
  }
}

</mosaic_0001>

<llo_original>
// kernel: hr_predictor_forward.1
$region0: #{hr_predictor_forward.1}
  #allocation0 [shape = 'u32[]', space=smem, size = 0x4, offset = 0x4, fixed_abs, tag = 'smem constant byte address 0x4 - core index']
  #allocation1 [shape = 'u32[144,128]{1,0:T(1,128)}', space=vmem, size = 0x12000, scoped, tag = 'internal scratch']
  %s0 = inlined_call_operand.vmem [shape: bf16[8,128], index: 0, kind: input, shape index: {}]
  %s1 = inlined_call_operand.hbm [shape: bf16[128,512], index: 1, kind: input, shape index: {}]
  %s2 = inlined_call_operand.vmem [shape: f32[1,512], index: 2, kind: input, shape index: {}]
  %s3 = inlined_call_operand.hbm [shape: bf16[512,256], index: 3, kind: input, shape index: {}]
  %s4 = inlined_call_operand.vmem [shape: f32[1,256], index: 4, kind: input, shape index: {}]
  %s5 = inlined_call_operand.hbm [shape: bf16[256,128], index: 5, kind: input, shape index: {}]
  %s6 = inlined_call_operand.vmem [shape: f32[1,128], index: 6, kind: input, shape index: {}]
  %s7 = inlined_call_operand.hbm [shape: bf16[128,128], index: 7, kind: input, shape index: {}]
  %s8 = inlined_call_operand.vmem [shape: f32[1,128], index: 8, kind: input, shape index: {}]
  %s9 = inlined_call_operand.hbm [shape: bf16[128,128], index: 9, kind: input, shape index: {}]
  %s10 = inlined_call_operand.vmem [shape: f32[1,128], index: 10, kind: input, shape index: {}]
  %s11 = inlined_call_operand.vmem [shape: f32[8,1], index: 11, kind: output, shape index: {}]
  %s12 = sld [smem:[#allocation0]]
  $region74: #{hr_predictor_forward.1} parent=0
    _
  %s14 = ssub.s32 1, %s12
  %s15 = scalar_select 0, %s14, %s12
  $region1: #{hr_predictor_forward.1} parent=0
    #allocation2 [shape = 'u8[131072]{0}', space=vmem, size = 0x20000, scoped, tag = 'input window, operand 1, single buffered']
    #allocation3 [shape = 's32[1]{0}', space=sflag, size = 0x4, scoped, tag = 'scoped memory for hr_predictor_forward.1']
    #allocation4 [shape = 'u8[262144]{0}', space=vmem, size = 0x40000, scoped, tag = 'input window, operand 3, single buffered']
    #allocation5 [shape = 's32[1]{0}', space=sflag, size = 0x4, scoped, tag = 'scoped memory for hr_predictor_forward.1']
    #allocation6 [shape = 'u8[65536]{0}', space=vmem, size = 0x10000, scoped, tag = 'input window, operand 5, single buffered']
    #allocation7 [shape = 'u8[32768]{0}', space=vmem, size = 0x8000, scoped, tag = 'input window, operand 7, single buffered']
    #allocation8 [shape = 's32[1]{0}', space=sflag, size = 0x4, scoped, tag = 'scoped memory for hr_predictor_forward.1']
    #allocation9 [shape = 'u8[32768]{0}', space=vmem, size = 0x8000, scoped, tag = 'input window, operand 9, single buffered']
    %16 = vsyncpa [#allocation3], 0
    %17 = vsyncpa [#allocation5], 0
    %18 = vsyncpa [#allocation8], 0
    // Predicated region
    $region2: #{hr_predictor_forward.1} parent=1 // pred_check
      _
    $region3: #{hr_predictor_forward.1} parent=1 // pred_check_branch
      %20 = sbr.rel (0) target = $region5
    $region4: #{hr_predictor_forward.1} parent=1 // pred_region
      _
    $region5: #{hr_predictor_forward.1} parent=1 // pred_fallthru
      _
    // Predicated region
    $region6: #{hr_predictor_forward.1} parent=1 // pred_check
      _
    $region7: #{hr_predictor_forward.1} parent=1 // pred_check_branch
      %22 = sbr.rel (0) target = $region9
    $region8: #{hr_predictor_forward.1} parent=1 // pred_region
      %s24 = ssub.s32 4096, 4096
      %25 = vsyncadd [#allocation3], %s24
      %s26 = sshll.u32 [#allocation2], 4
      %s27 = int_to_ptr.vmem [resolvable:$true] %s26
      %32 = dma.hbm_to_vmem [thread:$0]  %s1, 4096, %s27, [#allocation3], 256, 256, 16
    $region9: #{hr_predictor_forward.1} parent=1 // pred_fallthru
      _
    // Predicated region
    $region10: #{hr_predictor_forward.1} parent=1 // pred_check
      _
    $region11: #{hr_predictor_forward.1} parent=1 // pred_check_branch
      %34 = sbr.rel (0) target = $region13
    $region12: #{hr_predictor_forward.1} parent=1 // pred_region
      _
    $region13: #{hr_predictor_forward.1} parent=1 // pred_fallthru
      _
    // Predicated region
    $region14: #{hr_predictor_forward.1} parent=1 // pred_check
      _
    $region15: #{hr_predictor_forward.1} parent=1 // pred_check_branch
      %36 = sbr.rel (0) target = $region17
    $region16: #{hr_predictor_forward.1} parent=1 // pred_region
      %s38 = ssub.s32 8192, 8192
      %39 = vsyncadd [#allocation5], %s38
      %s40 = sshll.u32 [#allocation4], 4
      %s41 = int_to_ptr.vmem [resolvable:$true] %s40
      %46 = dma.hbm_to_vmem [thread:$0]  %s3, 8192, %s41, [#allocation5], 128, 128, 8
    $region17: #{hr_predictor_forward.1} parent=1 // pred_fallthru
      _
    // Predicated region
    $region18: #{hr_predictor_forward.1} parent=1 // pred_check
      _
    $region19: #{hr_predictor_forward.1} parent=1 // pred_check_branch
      %48 = sbr.rel (0) target = $region21
    $region20: #{hr_predictor_forward.1} parent=1 // pred_region
      _
    $region21: #{hr_predictor_forward.1} parent=1 // pred_fallthru
      _
    // Predicated region
    $region22: #{hr_predictor_forward.1} parent=1 // pred_check
      _
    $region23: #{hr_predictor_forward.1} parent=1 // pred_check_branch
      %50 = sbr.rel (0) target = $region25
    $region24: #{hr_predictor_forward.1} parent=1 // pred_region
      %s52 = ssub.s32 2048, 2048
      %53 = vsyncadd [#allocation5], %s52
      %s54 = sshll.u32 [#allocation6], 4
      %s55 = int_to_ptr.vmem [resolvable:$true] %s54
      %60 = dma.hbm_to_vmem [thread:$0]  %s5, 2048, %s55, [#allocation5], 64, 64, 4
    $region25: #{hr_predictor_forward.1} parent=1 // pred_fallthru
      _
    // Predicated region
    $region26: #{hr_predictor_forward.1} parent=1 // pred_check
      _
    $region27: #{hr_predictor_forward.1} parent=1 // pred_check_branch
      %62 = sbr.rel (0) target = $region29
    $region28: #{hr_predictor_forward.1} parent=1 // pred_region
      _
    $region29: #{hr_predictor_forward.1} parent=1 // pred_fallthru
      _
    // Predicated region
    $region30: #{hr_predictor_forward.1} parent=1 // pred_check
      _
    $region31: #{hr_predictor_forward.1} parent=1 // pred_check_branch
      %64 = sbr.rel (0) target = $region33
    $region32: #{hr_predictor_forward.1} parent=1 // pred_region
      %s66 = ssub.s32 1024, 1024
      %67 = vsyncadd [#allocation8], %s66
      %s68 = sshll.u32 [#allocation7], 4
      %s69 = int_to_ptr.vmem [resolvable:$true] %s68
      %74 = dma.hbm_to_vmem [thread:$0]  %s7, 1024, %s69, [#allocation8], 64, 64, 4
    $region33: #{hr_predictor_forward.1} parent=1 // pred_fallthru
      _
    // Predicated region
    $region34: #{hr_predictor_forward.1} parent=1 // pred_check
      _
    $region35: #{hr_predictor_forward.1} parent=1 // pred_check_branch
      %76 = sbr.rel (0) target = $region37
    $region36: #{hr_predictor_forward.1} parent=1 // pred_region
      _
    $region37: #{hr_predictor_forward.1} parent=1 // pred_fallthru
      _
    // Predicated region
    $region38: #{hr_predictor_forward.1} parent=1 // pred_check
      _
    $region39: #{hr_predictor_forward.1} parent=1 // pred_check_branch
      %78 = sbr.rel (0) target = $region41
    $region40: #{hr_predictor_forward.1} parent=1 // pred_region
      %s80 = ssub.s32 1024, 1024
      %81 = vsyncadd [#allocation8], %s80
      %s82 = sshll.u32 [#allocation9], 4
      %s83 = int_to_ptr.vmem [resolvable:$true] %s82
      %88 = dma.hbm_to_vmem [thread:$0]  %s9, 1024, %s83, [#allocation8], 64, 64, 4
    $region41: #{hr_predictor_forward.1} parent=1 // pred_fallthru
      _
    // Predicated region
    $region42: #{hr_predictor_forward.1} parent=1 // pred_check
      _
    $region43: #{hr_predictor_forward.1} parent=1 // pred_check_branch
      %90 = sbr.rel (0) target = $region45
    $region44: #{hr_predictor_forward.1} parent=1 // pred_region
      _
    $region45: #{hr_predictor_forward.1} parent=1 // pred_fallthru
      _
    // Predicated region
    $region46: #{hr_predictor_forward.1} parent=1 // pred_check
      _
    $region47: #{hr_predictor_forward.1} parent=1 // pred_check_branch
      %92 = sbr.rel (0) target = $region49
    $region48: #{hr_predictor_forward.1} parent=1 // pred_region
      %93 = dma.done [#allocation3], 4096
    $region49: #{hr_predictor_forward.1} parent=1 // pred_fallthru
      _
    // Predicated region
    $region50: #{hr_predictor_forward.1} parent=1 // pred_check
      _
    $region51: #{hr_predictor_forward.1} parent=1 // pred_check_branch
      %95 = sbr.rel (0) target = $region53
    $region52: #{hr_predictor_forward.1} parent=1 // pred_region
      %96 = dma.done [#allocation5], 8192
    $region53: #{hr_predictor_forward.1} parent=1 // pred_fallthru
      _
    // Predicated region
    $region54: #{hr_predictor_forward.1} parent=1 // pred_check
      _
    $region55: #{hr_predictor_forward.1} parent=1 // pred_check_branch
      %98 = sbr.rel (0) target = $region57
    $region56: #{hr_predictor_forward.1} parent=1 // pred_region
      %99 = dma.done [#allocation5], 2048
    $region57: #{hr_predictor_forward.1} parent=1 // pred_fallthru
      _
    // Predicated region
    $region58: #{hr_predictor_forward.1} parent=1 // pred_check
      _
    $region59: #{hr_predictor_forward.1} parent=1 // pred_check_branch
      %101 = sbr.rel (0) target = $region61
    $region60: #{hr_predictor_forward.1} parent=1 // pred_region
      %102 = dma.done [#allocation8], 1024
    $region61: #{hr_predictor_forward.1} parent=1 // pred_fallthru
      _
    // Predicated region
    $region62: #{hr_predictor_forward.1} parent=1 // pred_check
      _
    $region63: #{hr_predictor_forward.1} parent=1 // pred_check_branch
      %104 = sbr.rel (0) target = $region65
    $region64: #{hr_predictor_forward.1} parent=1 // pred_region
      %105 = dma.done [#allocation8], 1024
    $region65: #{hr_predictor_forward.1} parent=1 // pred_fallthru
      _
    %v107 = vld [vmem:[%s0] sm:$0xf]
    %v108 = vld [vmem:[#allocation2] sm:$0xff]
    %v109 = vld [vmem:[#allocation2 + $0x8] sm:$0xff]
    %v110 = vld [vmem:[#allocation2 + $0x10] sm:$0xff]
    %v111 = vld [vmem:[#allocation2 + $0x18] sm:$0xff]
    %v112 = vld [vmem:[#allocation2 + $0x20] sm:$0xff]
    %v113 = vld [vmem:[#allocation2 + $0x28] sm:$0xff]
    %v114 = vld [vmem:[#allocation2 + $0x30] sm:$0xff]
    %v115 = vld [vmem:[#allocation2 + $0x38] sm:$0xff]
    %v116 = vld [vmem:[#allocation2 + $0x40] sm:$0xff]
    %v117 = vld [vmem:[#allocation2 + $0x48] sm:$0xff]
    %v118 = vld [vmem:[#allocation2 + $0x50] sm:$0xff]
    %v119 = vld [vmem:[#allocation2 + $0x58] sm:$0xff]
    %v120 = vld [vmem:[#allocation2 + $0x60] sm:$0xff]
    %v121 = vld [vmem:[#allocation2 + $0x68] sm:$0xff]
    %v122 = vld [vmem:[#allocation2 + $0x70] sm:$0xff]
    %v123 = vld [vmem:[#allocation2 + $0x78] sm:$0xff]
    %v124 = vld [vmem:[#allocation2 + $0x80] sm:$0xff]
    %v125 = vld [vmem:[#allocation2 + $0x88] sm:$0xff]
    %v126 = vld [vmem:[#allocation2 + $0x90] sm:$0xff]
    %v127 = vld [vmem:[#allocation2 + $0x98] sm:$0xff]
    %v128 = vld [vmem:[#allocation2 + $0xa0] sm:$0xff]
    %v129 = vld [vmem:[#allocation2 + $0xa8] sm:$0xff]
    %v130 = vld [vmem:[#allocation2 + $0xb0] sm:$0xff]
    %v131 = vld [vmem:[#allocation2 + $0xb8] sm:$0xff]
    %v132 = vld [vmem:[#allocation2 + $0xc0] sm:$0xff]
    %v133 = vld [vmem:[#allocation2 + $0xc8] sm:$0xff]
    %v134 = vld [vmem:[#allocation2 + $0xd0] sm:$0xff]
    %v135 = vld [vmem:[#allocation2 + $0xd8] sm:$0xff]
    %v136 = vld [vmem:[#allocation2 + $0xe0] sm:$0xff]
    %v137 = vld [vmem:[#allocation2 + $0xe8] sm:$0xff]
    %v138 = vld [vmem:[#allocation2 + $0xf0] sm:$0xff]
    %v139 = vld [vmem:[#allocation2 + $0xf8] sm:$0xff]
    %v140 = vld [vmem:[%s2] sm:$0xf]
    %v142 = vlaneseq
    %v143 = vshrl.u32 %v142, 7
    %v144 = vsub.s32 0, %v143
    %v145 = vrot.slane %v140, %v144
    %v146 = vlaneseq
    %v147 = vshrl.u32 %v146, 7
    %v148 = vsub.s32 1, %v147
    %v149 = vrot.slane %v140, %v148
    %v150 = vlaneseq
    %v151 = vshrl.u32 %v150, 7
    %v152 = vsub.s32 2, %v151
    %v153 = vrot.slane %v140, %v152
    %v154 = vlaneseq
    %v155 = vshrl.u32 %v154, 7
    %v156 = vsub.s32 3, %v155
    %v157 = vrot.slane %v140, %v156
    %v194 = vunpack.c.l.b16 %v108
    %v195 = vunpack.c.h.b16 %v108
    %v196 = vunpack.c.l.b16 %v109
    %v197 = vunpack.c.h.b16 %v109
    %v198 = vunpack.c.l.b16 %v110
    %v199 = vunpack.c.h.b16 %v110
    %v200 = vunpack.c.l.b16 %v111
    %v201 = vunpack.c.h.b16 %v111
    %v202 = vunpack.c.l.b16 %v112
    %v203 = vunpack.c.h.b16 %v112
    %v204 = vunpack.c.l.b16 %v113
    %v205 = vunpack.c.h.b16 %v113
    %v206 = vunpack.c.l.b16 %v114
    %v207 = vunpack.c.h.b16 %v114
    %v208 = vunpack.c.l.b16 %v115
    %v209 = vunpack.c.h.b16 %v115
    %v210 = vunpack.c.l.b16 %v116
    %v211 = vunpack.c.h.b16 %v116
    %v212 = vunpack.c.l.b16 %v117
    %v213 = vunpack.c.h.b16 %v117
    %v214 = vunpack.c.l.b16 %v118
    %v215 = vunpack.c.h.b16 %v118
    %v216 = vunpack.c.l.b16 %v119
    %v217 = vunpack.c.h.b16 %v119
    %v218 = vunpack.c.l.b16 %v120
    %v219 = vunpack.c.h.b16 %v120
    %v220 = vunpack.c.l.b16 %v121
    %v221 = vunpack.c.h.b16 %v121
    %v222 = vunpack.c.l.b16 %v122
    %v223 = vunpack.c.h.b16 %v122
    %v224 = vunpack.c.l.b16 %v123
    %v225 = vunpack.c.h.b16 %v123
    %v226 = vunpack.c.l.b16 %v124
    %v227 = vunpack.c.h.b16 %v124
    %v228 = vunpack.c.l.b16 %v125
    %v229 = vunpack.c.h.b16 %v125
    %v230 = vunpack.c.l.b16 %v126
    %v231 = vunpack.c.h.b16 %v126
    %v232 = vunpack.c.l.b16 %v127
    %v233 = vunpack.c.h.b16 %v127
    %v234 = vunpack.c.l.b16 %v128
    %v235 = vunpack.c.h.b16 %v128
    %v236 = vunpack.c.l.b16 %v129
    %v237 = vunpack.c.h.b16 %v129
    %v238 = vunpack.c.l.b16 %v130
    %v239 = vunpack.c.h.b16 %v130
    %v240 = vunpack.c.l.b16 %v131
    %v241 = vunpack.c.h.b16 %v131
    %v242 = vunpack.c.l.b16 %v132
    %v243 = vunpack.c.h.b16 %v132
    %v244 = vunpack.c.l.b16 %v133
    %v245 = vunpack.c.h.b16 %v133
    %v246 = vunpack.c.l.b16 %v134
    %v247 = vunpack.c.h.b16 %v134
    %v248 = vunpack.c.l.b16 %v135
    %v249 = vunpack.c.h.b16 %v135
    %v250 = vunpack.c.l.b16 %v136
    %v251 = vunpack.c.h.b16 %v136
    %v252 = vunpack.c.l.b16 %v137
    %v253 = vunpack.c.h.b16 %v137
    %v254 = vunpack.c.l.b16 %v138
    %v255 = vunpack.c.h.b16 %v138
    %v256 = vunpack.c.l.b16 %v139
    %v257 = vunpack.c.h.b16 %v139
    %v258 = vpack.c.b16 %v198, %v194
    %v259 = vpack.c.b16 %v199, %v195
    %v260 = vpack.c.b16 %v200, %v196
    %v261 = vpack.c.b16 %v201, %v197
    %v262 = vpack.c.b16 %v206, %v202
    %v263 = vpack.c.b16 %v207, %v203
    %v264 = vpack.c.b16 %v208, %v204
    %v265 = vpack.c.b16 %v209, %v205
    %v266 = vpack.c.b16 %v214, %v210
    %v267 = vpack.c.b16 %v215, %v211
    %v268 = vpack.c.b16 %v216, %v212
    %v269 = vpack.c.b16 %v217, %v213
    %v270 = vpack.c.b16 %v222, %v218
    %v271 = vpack.c.b16 %v223, %v219
    %v272 = vpack.c.b16 %v224, %v220
    %v273 = vpack.c.b16 %v225, %v221
    %v274 = vpack.c.b16 %v230, %v226
    %v275 = vpack.c.b16 %v231, %v227
    %v276 = vpack.c.b16 %v232, %v228
    %v277 = vpack.c.b16 %v233, %v229
    %v278 = vpack.c.b16 %v238, %v234
    %v279 = vpack.c.b16 %v239, %v235
    %v280 = vpack.c.b16 %v240, %v236
    %v281 = vpack.c.b16 %v241, %v237
    %v282 = vpack.c.b16 %v246, %v242
    %v283 = vpack.c.b16 %v247, %v243
    %v284 = vpack.c.b16 %v248, %v244
    %v285 = vpack.c.b16 %v249, %v245
    %v286 = vpack.c.b16 %v254, %v250
    %v287 = vpack.c.b16 %v255, %v251
    %v288 = vpack.c.b16 %v256, %v252
    %v289 = vpack.c.b16 %v257, %v253
    %322 = vmatprep.subr.bf16.mxu0 %v287
    %323 = vmatpush1.bf16.msra.mxu0 %v286
    %324 = vmatprep.subr.bf16.mxu0 %v283
    %325 = vmatpush1.bf16.msra.mxu0 %v282
    %326 = vmatprep.subr.bf16.mxu0 %v279
    %327 = vmatpush1.bf16.msra.mxu0 %v278
    %328 = vmatprep.subr.bf16.mxu0 %v275
    %329 = vmatpush1.bf16.msra.mxu0 %v274
    %330 = vmatprep.subr.bf16.mxu0 %v271
    %331 = vmatpush1.bf16.msra.mxu0 %v270
    %332 = vmatprep.subr.bf16.mxu0 %v267
    %333 = vmatpush1.bf16.msra.mxu0 %v266
    %334 = vmatprep.subr.bf16.mxu0 %v263
    %335 = vmatpush1.bf16.msra.mxu0 %v262
    %336 = vmatprep.subr.bf16.mxu0 %v259
    %337 = vmatpush1.bf16.msra.mxu0 %v258
    %338 = vmatprep.subr.bf16.mxu0 0
    %339 = vmatpush2.bf16.msra.mxu0 0
    %340 = vmatprep.subr.bf16.mxu0 0
    %341 = vmatpush2.bf16.msra.mxu0 0
    %342 = vmatprep.subr.bf16.mxu0 0
    %343 = vmatpush2.bf16.msra.mxu0 0
    %344 = vmatprep.subr.bf16.mxu0 0
    %345 = vmatpush2.bf16.msra.mxu0 0
    %346 = vmatprep.subr.bf16.mxu0 0
    %347 = vmatpush2.bf16.msra.mxu0 0
    %348 = vmatprep.subr.bf16.mxu0 0
    %349 = vmatpush2.bf16.msra.mxu0 0
    %350 = vmatprep.subr.bf16.mxu0 0
    %351 = vmatpush2.bf16.msra.mxu0 0
    %352 = vmatprep.subr.bf16.mxu0 0
    %353 = vmatpush2.bf16.msra.mxu0 0
    %354 = vmatprep.mubr.bf16.mxu0 0
    %355 = vmatmul.mubr.bf16.gmra.mxu0 %v107
    %v356 = vpop.f32.mrf.mxu0
    %v357 = vadd.f32 %v145, %v356
    %v358 = vpop.f32.mrf.mxu0
    %v359 = vadd.f32 %v149, %v358
    %v360 = vpop.f32.mrf.mxu0
    %v361 = vpop.f32.mrf.mxu0
    %362 = vdwg.mxu0
    %363 = vmatprep.subr.bf16.mxu0 %v289
    %364 = vmatpush1.bf16.msra.mxu0 %v288
    %365 = vmatprep.subr.bf16.mxu0 %v285
    %366 = vmatpush1.bf16.msra.mxu0 %v284
    %367 = vmatprep.subr.bf16.mxu0 %v281
    %368 = vmatpush1.bf16.msra.mxu0 %v280
    %369 = vmatprep.subr.bf16.mxu0 %v277
    %370 = vmatpush1.bf16.msra.mxu0 %v276
    %371 = vmatprep.subr.bf16.mxu0 %v273
    %372 = vmatpush1.bf16.msra.mxu0 %v272
    %373 = vmatprep.subr.bf16.mxu0 %v269
    %374 = vmatpush1.bf16.msra.mxu0 %v268
    %375 = vmatprep.subr.bf16.mxu0 %v265
    %376 = vmatpush1.bf16.msra.mxu0 %v264
    %377 = vmatprep.subr.bf16.mxu0 %v261
    %378 = vmatpush1.bf16.msra.mxu0 %v260
    %379 = vmatprep.subr.bf16.mxu0 0
    %380 = vmatpush2.bf16.msra.mxu0 0
    %381 = vmatprep.subr.bf16.mxu0 0
    %382 = vmatpush2.bf16.msra.mxu0 0
    %383 = vmatprep.subr.bf16.mxu0 0
    %384 = vmatpush2.bf16.msra.mxu0 0
    %385 = vmatprep.subr.bf16.mxu0 0
    %386 = vmatpush2.bf16.msra.mxu0 0
    %387 = vmatprep.subr.bf16.mxu0 0
    %388 = vmatpush2.bf16.msra.mxu0 0
    %389 = vmatprep.subr.bf16.mxu0 0
    %390 = vmatpush2.bf16.msra.mxu0 0
    %391 = vmatprep.subr.bf16.mxu0 0
    %392 = vmatpush2.bf16.msra.mxu0 0
    %393 = vmatprep.subr.bf16.mxu0 0
    %394 = vmatpush2.bf16.msra.mxu0 0
    %395 = vmatprep.mubr.bf16.mxu0 0
    %396 = vmatmul.mubr.bf16.gmra.mxu0 %v107
    %v397 = vpop.f32.mrf.mxu0
    %v398 = vadd.f32 %v153, %v397
    %v399 = vpop.f32.mrf.mxu0
    %v400 = vadd.f32 %v157, %v399
    %v401 = vpop.f32.mrf.mxu0
    %v402 = vpop.f32.mrf.mxu0
    %403 = vdwg.mxu0
    %v404 = vmax.f32 %v357, 0.0
    %v405 = vmax.f32 %v359, 0.0
    %v406 = vmax.f32 %v398, 0.0
    %v407 = vmax.f32 %v400, 0.0
    %v408 = vpack.c.bf16 %v404, %v404
    %v409 = vpack.c.bf16 %v405, %v405
    %v410 = vpack.c.bf16 %v406, %v406
    %v411 = vpack.c.bf16 %v407, %v407
    %v412 = vld [vmem:[#allocation4] sm:$0xff]
    %v413 = vld [vmem:[#allocation4 + $0x8] sm:$0xff]
    %v414 = vld [vmem:[#allocation4 + $0x10] sm:$0xff]
    %v415 = vld [vmem:[#allocation4 + $0x18] sm:$0xff]
    %v416 = vld [vmem:[#allocation4 + $0x20] sm:$0xff]
    %v417 = vld [vmem:[#allocation4 + $0x28] sm:$0xff]
    %v418 = vld [vmem:[#allocation4 + $0x30] sm:$0xff]
    %v419 = vld [vmem:[#allocation4 + $0x38] sm:$0xff]
    %v420 = vld [vmem:[#allocation4 + $0x40] sm:$0xff]
    %v421 = vld [vmem:[#allocation4 + $0x48] sm:$0xff]
    %v422 = vld [vmem:[#allocation4 + $0x50] sm:$0xff]
    %v423 = vld [vmem:[#allocation4 + $0x58] sm:$0xff]
    %v424 = vld [vmem:[#allocation4 + $0x60] sm:$0xff]
    %v425 = vld [vmem:[#allocation4 + $0x68] sm:$0xff]
    %v426 = vld [vmem:[#allocation4 + $0x70] sm:$0xff]
    %v427 = vld [vmem:[#allocation4 + $0x78] sm:$0xff]
    %v428 = vld [vmem:[#allocation4 + $0x80] sm:$0xff]
    %v429 = vld [vmem:[#allocation4 + $0x88] sm:$0xff]
    %v430 = vld [vmem:[#allocation4 + $0x90] sm:$0xff]
    %v431 = vld [vmem:[#allocation4 + $0x98] sm:$0xff]
    %v432 = vld [vmem:[#allocation4 + $0xa0] sm:$0xff]
    %v433 = vld [vmem:[#allocation4 + $0xa8] sm:$0xff]
    %v434 = vld [vmem:[#allocation4 + $0xb0] sm:$0xff]
    %v435 = vld [vmem:[#allocation4 + $0xb8] sm:$0xff]
    %v436 = vld [vmem:[#allocation4 + $0xc0] sm:$0xff]
    %v437 = vld [vmem:[#allocation4 + $0xc8] sm:$0xff]
    %v438 = vld [vmem:[#allocation4 + $0xd0] sm:$0xff]
    %v439 = vld [vmem:[#allocation4 + $0xd8] sm:$0xff]
    %v440 = vld [vmem:[#allocation4 + $0xe0] sm:$0xff]
    %v441 = vld [vmem:[#allocation4 + $0xe8] sm:$0xff]
    %v442 = vld [vmem:[#allocation4 + $0xf0] sm:$0xff]
    %v443 = vld [vmem:[#allocation4 + $0xf8] sm:$0xff]
    %v444 = vld [vmem:[#allocation4 + $0x100] sm:$0xff]
    %v445 = vld [vmem:[#allocation4 + $0x108] sm:$0xff]
    %v446 = vld [vmem:[#allocation4 + $0x110] sm:$0xff]
    %v447 = vld [vmem:[#allocation4 + $0x118] sm:$0xff]
    %v448 = vld [vmem:[#allocation4 + $0x120] sm:$0xff]
    %v449 = vld [vmem:[#allocation4 + $0x128] sm:$0xff]
    %v450 = vld [vmem:[#allocation4 + $0x130] sm:$0xff]
    %v451 = vld [vmem:[#allocation4 + $0x138] sm:$0xff]
    %v452 = vld [vmem:[#allocation4 + $0x140] sm:$0xff]
    %v453 = vld [vmem:[#allocation4 + $0x148] sm:$0xff]
    %v454 = vld [vmem:[#allocation4 + $0x150] sm:$0xff]
    %v455 = vld [vmem:[#allocation4 + $0x158] sm:$0xff]
    %v456 = vld [vmem:[#allocation4 + $0x160] sm:$0xff]
    %v457 = vld [vmem:[#allocation4 + $0x168] sm:$0xff]
    %v458 = vld [vmem:[#allocation4 + $0x170] sm:$0xff]
    %v459 = vld [vmem:[#allocation4 + $0x178] sm:$0xff]
    %v460 = vld [vmem:[#allocation4 + $0x180] sm:$0xff]
    %v461 = vld [vmem:[#allocation4 + $0x188] sm:$0xff]
    %v462 = vld [vmem:[#allocation4 + $0x190] sm:$0xff]
    %v463 = vld [vmem:[#allocation4 + $0x198] sm:$0xff]
    %v464 = vld [vmem:[#allocation4 + $0x1a0] sm:$0xff]
    %v465 = vld [vmem:[#allocation4 + $0x1a8] sm:$0xff]
    %v466 = vld [vmem:[#allocation4 + $0x1b0] sm:$0xff]
    %v467 = vld [vmem:[#allocation4 + $0x1b8] sm:$0xff]
    %v468 = vld [vmem:[#allocation4 + $0x1c0] sm:$0xff]
    %v469 = vld [vmem:[#allocation4 + $0x1c8] sm:$0xff]
    %v470 = vld [vmem:[#allocation4 + $0x1d0] sm:$0xff]
    %v471 = vld [vmem:[#allocation4 + $0x1d8] sm:$0xff]
    %v472 = vld [vmem:[#allocation4 + $0x1e0] sm:$0xff]
    %v473 = vld [vmem:[#allocation4 + $0x1e8] sm:$0xff]
    %v474 = vld [vmem:[#allocation4 + $0x1f0] sm:$0xff]
    %v475 = vld [vmem:[#allocation4 + $0x1f8] sm:$0xff]
    %v476 = vld [vmem:[%s4] sm:$0x3]
    %v478 = vlaneseq
    %v479 = vshrl.u32 %v478, 7
    %v480 = vsub.s32 0, %v479
    %v481 = vrot.slane %v476, %v480
    %v482 = vlaneseq
    %v483 = vshrl.u32 %v482, 7
    %v484 = vsub.s32 1, %v483
    %v485 = vrot.slane %v476, %v484
    %v552 = vunpack.c.l.b16 %v412
    %v553 = vunpack.c.h.b16 %v412
    %v554 = vunpack.c.l.b16 %v413
    %v555 = vunpack.c.h.b16 %v413
    %v556 = vunpack.c.l.b16 %v414
    %v557 = vunpack.c.h.b16 %v414
    %v558 = vunpack.c.l.b16 %v415
    %v559 = vunpack.c.h.b16 %v415
    %v560 = vunpack.c.l.b16 %v416
    %v561 = vunpack.c.h.b16 %v416
    %v562 = vunpack.c.l.b16 %v417
    %v563 = vunpack.c.h.b16 %v417
    %v564 = vunpack.c.l.b16 %v418
    %v565 = vunpack.c.h.b16 %v418
    %v566 = vunpack.c.l.b16 %v419
    %v567 = vunpack.c.h.b16 %v419
    %v568 = vunpack.c.l.b16 %v420
    %v569 = vunpack.c.h.b16 %v420
    %v570 = vunpack.c.l.b16 %v421
    %v571 = vunpack.c.h.b16 %v421
    %v572 = vunpack.c.l.b16 %v422
    %v573 = vunpack.c.h.b16 %v422
    %v574 = vunpack.c.l.b16 %v423
    %v575 = vunpack.c.h.b16 %v423
    %v576 = vunpack.c.l.b16 %v424
    %v577 = vunpack.c.h.b16 %v424
    %v578 = vunpack.c.l.b16 %v425
    %v579 = vunpack.c.h.b16 %v425
    %v580 = vunpack.c.l.b16 %v426
    %v581 = vunpack.c.h.b16 %v426
    %v582 = vunpack.c.l.b16 %v427
    %v583 = vunpack.c.h.b16 %v427
    %v584 = vunpack.c.l.b16 %v428
    %v585 = vunpack.c.h.b16 %v428
    %v586 = vunpack.c.l.b16 %v429
    %v587 = vunpack.c.h.b16 %v429
    %v588 = vunpack.c.l.b16 %v430
    %v589 = vunpack.c.h.b16 %v430
    %v590 = vunpack.c.l.b16 %v431
    %v591 = vunpack.c.h.b16 %v431
    %v592 = vunpack.c.l.b16 %v432
    %v593 = vunpack.c.h.b16 %v432
    %v594 = vunpack.c.l.b16 %v433
    %v595 = vunpack.c.h.b16 %v433
    %v596 = vunpack.c.l.b16 %v434
    %v597 = vunpack.c.h.b16 %v434
    %v598 = vunpack.c.l.b16 %v435
    %v599 = vunpack.c.h.b16 %v435
    %v600 = vunpack.c.l.b16 %v436
    %v601 = vunpack.c.h.b16 %v436
    %v602 = vunpack.c.l.b16 %v437
    %v603 = vunpack.c.h.b16 %v437
    %v604 = vunpack.c.l.b16 %v438
    %v605 = vunpack.c.h.b16 %v438
    %v606 = vunpack.c.l.b16 %v439
    %v607 = vunpack.c.h.b16 %v439
    %v608 = vunpack.c.l.b16 %v440
    %v609 = vunpack.c.h.b16 %v440
    %v610 = vunpack.c.l.b16 %v441
    %v611 = vunpack.c.h.b16 %v441
    %v612 = vunpack.c.l.b16 %v442
    %v613 = vunpack.c.h.b16 %v442
    %v614 = vunpack.c.l.b16 %v443
    %v615 = vunpack.c.h.b16 %v443
    %v616 = vunpack.c.l.b16 %v444
    %v617 = vunpack.c.h.b16 %v444
    %v618 = vunpack.c.l.b16 %v445
    %v619 = vunpack.c.h.b16 %v445
    %v620 = vunpack.c.l.b16 %v446
    %v621 = vunpack.c.h.b16 %v446
    %v622 = vunpack.c.l.b16 %v447
    %v623 = vunpack.c.h.b16 %v447
    %v624 = vunpack.c.l.b16 %v448
    %v625 = vunpack.c.h.b16 %v448
    %v626 = vunpack.c.l.b16 %v449
    %v627 = vunpack.c.h.b16 %v449
    %v628 = vunpack.c.l.b16 %v450
    %v629 = vunpack.c.h.b16 %v450
    %v630 = vunpack.c.l.b16 %v451
    %v631 = vunpack.c.h.b16 %v451
    %v632 = vunpack.c.l.b16 %v452
    %v633 = vunpack.c.h.b16 %v452
    %v634 = vunpack.c.l.b16 %v453
    %v635 = vunpack.c.h.b16 %v453
    %v636 = vunpack.c.l.b16 %v454
    %v637 = vunpack.c.h.b16 %v454
    %v638 = vunpack.c.l.b16 %v455
    %v639 = vunpack.c.h.b16 %v455
    %v640 = vunpack.c.l.b16 %v456
    %v641 = vunpack.c.h.b16 %v456
    %v642 = vunpack.c.l.b16 %v457
    %v643 = vunpack.c.h.b16 %v457
    %v644 = vunpack.c.l.b16 %v458
    %v645 = vunpack.c.h.b16 %v458
    %v646 = vunpack.c.l.b16 %v459
    %v647 = vunpack.c.h.b16 %v459
    %v648 = vunpack.c.l.b16 %v460
    %v649 = vunpack.c.h.b16 %v460
    %v650 = vunpack.c.l.b16 %v461
    %v651 = vunpack.c.h.b16 %v461
    %v652 = vunpack.c.l.b16 %v462
    %v653 = vunpack.c.h.b16 %v462
    %v654 = vunpack.c.l.b16 %v463
    %v655 = vunpack.c.h.b16 %v463
    %v656 = vunpack.c.l.b16 %v464
    %v657 = vunpack.c.h.b16 %v464
    %v658 = vunpack.c.l.b16 %v465
    %v659 = vunpack.c.h.b16 %v465
    %v660 = vunpack.c.l.b16 %v466
    %v661 = vunpack.c.h.b16 %v466
    %v662 = vunpack.c.l.b16 %v467
    %v663 = vunpack.c.h.b16 %v467
    %v664 = vunpack.c.l.b16 %v468
    %v665 = vunpack.c.h.b16 %v468
    %v666 = vunpack.c.l.b16 %v469
    %v667 = vunpack.c.h.b16 %v469
    %v668 = vunpack.c.l.b16 %v470
    %v669 = vunpack.c.h.b16 %v470
    %v670 = vunpack.c.l.b16 %v471
    %v671 = vunpack.c.h.b16 %v471
    %v672 = vunpack.c.l.b16 %v472
    %v673 = vunpack.c.h.b16 %v472
    %v674 = vunpack.c.l.b16 %v473
    %v675 = vunpack.c.h.b16 %v473
    %v676 = vunpack.c.l.b16 %v474
    %v677 = vunpack.c.h.b16 %v474
    %v678 = vunpack.c.l.b16 %v475
    %v679 = vunpack.c.h.b16 %v475
    %v680 = vpack.c.b16 %v554, %v552
    %v681 = vpack.c.b16 %v555, %v553
    %v682 = vpack.c.b16 %v558, %v556
    %v683 = vpack.c.b16 %v559, %v557
    %v684 = vpack.c.b16 %v562, %v560
    %v685 = vpack.c.b16 %v563, %v561
    %v686 = vpack.c.b16 %v566, %v564
    %v687 = vpack.c.b16 %v567, %v565
    %v688 = vpack.c.b16 %v570, %v568
    %v689 = vpack.c.b16 %v571, %v569
    %v690 = vpack.c.b16 %v574, %v572
    %v691 = vpack.c.b16 %v575, %v573
    %v692 = vpack.c.b16 %v578, %v576
    %v693 = vpack.c.b16 %v579, %v577
    %v694 = vpack.c.b16 %v582, %v580
    %v695 = vpack.c.b16 %v583, %v581
    %v696 = vpack.c.b16 %v586, %v584
    %v697 = vpack.c.b16 %v587, %v585
    %v698 = vpack.c.b16 %v590, %v588
    %v699 = vpack.c.b16 %v591, %v589
    %v700 = vpack.c.b16 %v594, %v592
    %v701 = vpack.c.b16 %v595, %v593
    %v702 = vpack.c.b16 %v598, %v596
    %v703 = vpack.c.b16 %v599, %v597
    %v704 = vpack.c.b16 %v602, %v600
    %v705 = vpack.c.b16 %v603, %v601
    %v706 = vpack.c.b16 %v606, %v604
    %v707 = vpack.c.b16 %v607, %v605
    %v708 = vpack.c.b16 %v610, %v608
    %v709 = vpack.c.b16 %v611, %v609
    %v710 = vpack.c.b16 %v614, %v612
    %v711 = vpack.c.b16 %v615, %v613
    %v712 = vpack.c.b16 %v618, %v616
    %v713 = vpack.c.b16 %v619, %v617
    %v714 = vpack.c.b16 %v622, %v620
    %v715 = vpack.c.b16 %v623, %v621
    %v716 = vpack.c.b16 %v626, %v624
    %v717 = vpack.c.b16 %v627, %v625
    %v718 = vpack.c.b16 %v630, %v628
    %v719 = vpack.c.b16 %v631, %v629
    %v720 = vpack.c.b16 %v634, %v632
    %v721 = vpack.c.b16 %v635, %v633
    %v722 = vpack.c.b16 %v638, %v636
    %v723 = vpack.c.b16 %v639, %v637
    %v724 = vpack.c.b16 %v642, %v640
    %v725 = vpack.c.b16 %v643, %v641
    %v726 = vpack.c.b16 %v646, %v644
    %v727 = vpack.c.b16 %v647, %v645
    %v728 = vpack.c.b16 %v650, %v648
    %v729 = vpack.c.b16 %v651, %v649
    %v730 = vpack.c.b16 %v654, %v652
    %v731 = vpack.c.b16 %v655, %v653
    %v732 = vpack.c.b16 %v658, %v656
    %v733 = vpack.c.b16 %v659, %v657
    %v734 = vpack.c.b16 %v662, %v660
    %v735 = vpack.c.b16 %v663, %v661
    %v736 = vpack.c.b16 %v666, %v664
    %v737 = vpack.c.b16 %v667, %v665
    %v738 = vpack.c.b16 %v670, %v668
    %v739 = vpack.c.b16 %v671, %v669
    %v740 = vpack.c.b16 %v674, %v672
    %v741 = vpack.c.b16 %v675, %v673
    %v742 = vpack.c.b16 %v678, %v676
    %v743 = vpack.c.b16 %v679, %v677
    %808 = vmatprep.subr.bf16.mxu0 %v695
    %809 = vmatpush1.bf16.msra.mxu0 %v694
    %810 = vmatprep.subr.bf16.mxu0 %v693
    %811 = vmatpush1.bf16.msra.mxu0 %v692
    %812 = vmatprep.subr.bf16.mxu0 %v691
    %813 = vmatpush1.bf16.msra.mxu0 %v690
    %814 = vmatprep.subr.bf16.mxu0 %v689
    %815 = vmatpush1.bf16.msra.mxu0 %v688
    %816 = vmatprep.subr.bf16.mxu0 %v687
    %817 = vmatpush1.bf16.msra.mxu0 %v686
    %818 = vmatprep.subr.bf16.mxu0 %v685
    %819 = vmatpush1.bf16.msra.mxu0 %v684
    %820 = vmatprep.subr.bf16.mxu0 %v683
    %821 = vmatpush1.bf16.msra.mxu0 %v682
    %822 = vmatprep.subr.bf16.mxu0 %v681
    %823 = vmatpush1.bf16.msra.mxu0 %v680
    %824 = vmatprep.subr.bf16.mxu0 %v711
    %825 = vmatpush2.bf16.msra.mxu0 %v710
    %826 = vmatprep.subr.bf16.mxu0 %v709
    %827 = vmatpush2.bf16.msra.mxu0 %v708
    %828 = vmatprep.subr.bf16.mxu0 %v707
    %829 = vmatpush2.bf16.msra.mxu0 %v706
    %830 = vmatprep.subr.bf16.mxu0 %v705
    %831 = vmatpush2.bf16.msra.mxu0 %v704
    %832 = vmatprep.subr.bf16.mxu0 %v703
    %833 = vmatpush2.bf16.msra.mxu0 %v702
    %834 = vmatprep.subr.bf16.mxu0 %v701
    %835 = vmatpush2.bf16.msra.mxu0 %v700
    %836 = vmatprep.subr.bf16.mxu0 %v699
    %837 = vmatpush2.bf16.msra.mxu0 %v698
    %838 = vmatprep.subr.bf16.mxu0 %v697
    %839 = vmatpush2.bf16.msra.mxu0 %v696
    %840 = vmatprep.mubr.bf16.mxu0 %v409
    %841 = vmatmul.mubr.bf16.gmra.mxu0 %v408
    %v842 = vpop.f32.mrf.mxu0
    %v843 = vadd.f32 %v481, %v842
    %v844 = vpop.f32.mrf.mxu0
    %v845 = vadd.f32 %v485, %v844
    %v846 = vpop.f32.mrf.mxu0
    %v847 = vpop.f32.mrf.mxu0
    %848 = vdwg.mxu0
    %849 = vmatprep.subr.bf16.mxu0 %v727
    %850 = vmatpush1.bf16.msra.mxu0 %v726
    %851 = vmatprep.subr.bf16.mxu0 %v725
    %852 = vmatpush1.bf16.msra.mxu0 %v724
    %853 = vmatprep.subr.bf16.mxu0 %v723
    %854 = vmatpush1.bf16.msra.mxu0 %v722
    %855 = vmatprep.subr.bf16.mxu0 %v721
    %856 = vmatpush1.bf16.msra.mxu0 %v720
    %857 = vmatprep.subr.bf16.mxu0 %v719
    %858 = vmatpush1.bf16.msra.mxu0 %v718
    %859 = vmatprep.subr.bf16.mxu0 %v717
    %860 = vmatpush1.bf16.msra.mxu0 %v716
    %861 = vmatprep.subr.bf16.mxu0 %v715
    %862 = vmatpush1.bf16.msra.mxu0 %v714
    %863 = vmatprep.subr.bf16.mxu0 %v713
    %864 = vmatpush1.bf16.msra.mxu0 %v712
    %865 = vmatprep.subr.bf16.mxu0 %v743
    %866 = vmatpush2.bf16.msra.mxu0 %v742
    %867 = vmatprep.subr.bf16.mxu0 %v741
    %868 = vmatpush2.bf16.msra.mxu0 %v740
    %869 = vmatprep.subr.bf16.mxu0 %v739
    %870 = vmatpush2.bf16.msra.mxu0 %v738
    %871 = vmatprep.subr.bf16.mxu0 %v737
    %872 = vmatpush2.bf16.msra.mxu0 %v736
    %873 = vmatprep.subr.bf16.mxu0 %v735
    %874 = vmatpush2.bf16.msra.mxu0 %v734
    %875 = vmatprep.subr.bf16.mxu0 %v733
    %876 = vmatpush2.bf16.msra.mxu0 %v732
    %877 = vmatprep.subr.bf16.mxu0 %v731
    %878 = vmatpush2.bf16.msra.mxu0 %v730
    %879 = vmatprep.subr.bf16.mxu0 %v729
    %880 = vmatpush2.bf16.msra.mxu0 %v728
    %881 = vmatprep.mubr.bf16.mxu0 %v411
    %882 = vmatmul.mubr.bf16.gmra.mxu0 %v410
    %v883 = vpop.f32.mrf.mxu0
    %v884 = vadd.f32 %v843, %v883
    %v885 = vpop.f32.mrf.mxu0
    %v886 = vadd.f32 %v845, %v885
    %v887 = vpop.f32.mrf.mxu0
    %v888 = vpop.f32.mrf.mxu0
    %889 = vdwg.mxu0
    %v890 = vmax.f32 %v884, 0.0
    %v891 = vmax.f32 %v886, 0.0
    %v892 = vpack.c.bf16 %v890, %v890
    %v893 = vpack.c.bf16 %v891, %v891
    %v894 = vld [vmem:[#allocation6] sm:$0xf]
    %v895 = vld [vmem:[#allocation6 + $0x4] sm:$0xf]
    %v896 = vld [vmem:[#allocation6 + $0x8] sm:$0xf]
    %v897 = vld [vmem:[#allocation6 + $0xc] sm:$0xf]
    %v898 = vld [vmem:[#allocation6 + $0x10] sm:$0xf]
    %v899 = vld [vmem:[#allocation6 + $0x14] sm:$0xf]
    %v900 = vld [vmem:[#allocation6 + $0x18] sm:$0xf]
    %v901 = vld [vmem:[#allocation6 + $0x1c] sm:$0xf]
    %v902 = vld [vmem:[#allocation6 + $0x20] sm:$0xf]
    %v903 = vld [vmem:[#allocation6 + $0x24] sm:$0xf]
    %v904 = vld [vmem:[#allocation6 + $0x28] sm:$0xf]
    %v905 = vld [vmem:[#allocation6 + $0x2c] sm:$0xf]
    %v906 = vld [vmem:[#allocation6 + $0x30] sm:$0xf]
    %v907 = vld [vmem:[#allocation6 + $0x34] sm:$0xf]
    %v908 = vld [vmem:[#allocation6 + $0x38] sm:$0xf]
    %v909 = vld [vmem:[#allocation6 + $0x3c] sm:$0xf]
    %v910 = vld [vmem:[#allocation6 + $0x40] sm:$0xf]
    %v911 = vld [vmem:[#allocation6 + $0x44] sm:$0xf]
    %v912 = vld [vmem:[#allocation6 + $0x48] sm:$0xf]
    %v913 = vld [vmem:[#allocation6 + $0x4c] sm:$0xf]
    %v914 = vld [vmem:[#allocation6 + $0x50] sm:$0xf]
    %v915 = vld [vmem:[#allocation6 + $0x54] sm:$0xf]
    %v916 = vld [vmem:[#allocation6 + $0x58] sm:$0xf]
    %v917 = vld [vmem:[#allocation6 + $0x5c] sm:$0xf]
    %v918 = vld [vmem:[#allocation6 + $0x60] sm:$0xf]
    %v919 = vld [vmem:[#allocation6 + $0x64] sm:$0xf]
    %v920 = vld [vmem:[#allocation6 + $0x68] sm:$0xf]
    %v921 = vld [vmem:[#allocation6 + $0x6c] sm:$0xf]
    %v922 = vld [vmem:[#allocation6 + $0x70] sm:$0xf]
    %v923 = vld [vmem:[#allocation6 + $0x74] sm:$0xf]
    %v924 = vld [vmem:[#allocation6 + $0x78] sm:$0xf]
    %v925 = vld [vmem:[#allocation6 + $0x7c] sm:$0xf]
    %v926 = vld [vmem:[%s6] sm:$0x1]
    %v928 = vlaneseq
    %v929 = vshrl.u32 %v928, 7
    %v930 = vsub.s32 0, %v929
    %v931 = vrot.slane %v926, %v930
    %v965 = vunpack.c.l.b16 %v894
    %v966 = vunpack.c.l.b16 %v895
    %v967 = vunpack.c.l.b16 %v896
    %v968 = vunpack.c.l.b16 %v897
    %v969 = vunpack.c.l.b16 %v898
    %v970 = vunpack.c.l.b16 %v899
    %v971 = vunpack.c.l.b16 %v900
    %v972 = vunpack.c.l.b16 %v901
    %v973 = vunpack.c.l.b16 %v902
    %v974 = vunpack.c.l.b16 %v903
    %v975 = vunpack.c.l.b16 %v904
    %v976 = vunpack.c.l.b16 %v905
    %v977 = vunpack.c.l.b16 %v906
    %v978 = vunpack.c.l.b16 %v907
    %v979 = vunpack.c.l.b16 %v908
    %v980 = vunpack.c.l.b16 %v909
    %v981 = vunpack.c.l.b16 %v910
    %v982 = vunpack.c.l.b16 %v911
    %v983 = vunpack.c.l.b16 %v912
    %v984 = vunpack.c.l.b16 %v913
    %v985 = vunpack.c.l.b16 %v914
    %v986 = vunpack.c.l.b16 %v915
    %v987 = vunpack.c.l.b16 %v916
    %v988 = vunpack.c.l.b16 %v917
    %v989 = vunpack.c.l.b16 %v918
    %v990 = vunpack.c.l.b16 %v919
    %v991 = vunpack.c.l.b16 %v920
    %v992 = vunpack.c.l.b16 %v921
    %v993 = vunpack.c.l.b16 %v922
    %v994 = vunpack.c.l.b16 %v923
    %v995 = vunpack.c.l.b16 %v924
    %v996 = vunpack.c.l.b16 %v925
    %v997 = vpack.c.b16 %v966, %v965
    %v998 = vpack.c.b16 %v968, %v967
    %v999 = vpack.c.b16 %v970, %v969
    %v1000 = vpack.c.b16 %v972, %v971
    %v1001 = vpack.c.b16 %v974, %v973
    %v1002 = vpack.c.b16 %v976, %v975
    %v1003 = vpack.c.b16 %v978, %v977
    %v1004 = vpack.c.b16 %v980, %v979
    %v1005 = vpack.c.b16 %v982, %v981
    %v1006 = vpack.c.b16 %v984, %v983
    %v1007 = vpack.c.b16 %v986, %v985
    %v1008 = vpack.c.b16 %v988, %v987
    %v1009 = vpack.c.b16 %v990, %v989
    %v1010 = vpack.c.b16 %v992, %v991
    %v1011 = vpack.c.b16 %v994, %v993
    %v1012 = vpack.c.b16 %v996, %v995
    %1029 = vmatprep.subr.bf16.mxu0 0
    %1030 = vmatpush1.bf16.msra.mxu0 %v1004
    %1031 = vmatprep.subr.bf16.mxu0 0
    %1032 = vmatpush1.bf16.msra.mxu0 %v1003
    %1033 = vmatprep.subr.bf16.mxu0 0
    %1034 = vmatpush1.bf16.msra.mxu0 %v1002
    %1035 = vmatprep.subr.bf16.mxu0 0
    %1036 = vmatpush1.bf16.msra.mxu0 %v1001
    %1037 = vmatprep.subr.bf16.mxu0 0
    %1038 = vmatpush1.bf16.msra.mxu0 %v1000
    %1039 = vmatprep.subr.bf16.mxu0 0
    %1040 = vmatpush1.bf16.msra.mxu0 %v999
    %1041 = vmatprep.subr.bf16.mxu0 0
    %1042 = vmatpush1.bf16.msra.mxu0 %v998
    %1043 = vmatprep.subr.bf16.mxu0 0
    %1044 = vmatpush1.bf16.msra.mxu0 %v997
    %1045 = vmatprep.subr.bf16.mxu0 0
    %1046 = vmatpush2.bf16.msra.mxu0 %v1012
    %1047 = vmatprep.subr.bf16.mxu0 0
    %1048 = vmatpush2.bf16.msra.mxu0 %v1011
    %1049 = vmatprep.subr.bf16.mxu0 0
    %1050 = vmatpush2.bf16.msra.mxu0 %v1010
    %1051 = vmatprep.subr.bf16.mxu0 0
    %1052 = vmatpush2.bf16.msra.mxu0 %v1009
    %1053 = vmatprep.subr.bf16.mxu0 0
    %1054 = vmatpush2.bf16.msra.mxu0 %v1008
    %1055 = vmatprep.subr.bf16.mxu0 0
    %1056 = vmatpush2.bf16.msra.mxu0 %v1007
    %1057 = vmatprep.subr.bf16.mxu0 0
    %1058 = vmatpush2.bf16.msra.mxu0 %v1006
    %1059 = vmatprep.subr.bf16.mxu0 0
    %1060 = vmatpush2.bf16.msra.mxu0 %v1005
    %1061 = vmatprep.mubr.bf16.mxu0 %v893
    %1062 = vmatmul.mubr.bf16.gmra.mxu0 %v892
    %v1063 = vpop.f32.mrf.mxu0
    %v1064 = vadd.f32 %v931, %v1063
    %v1065 = vpop.f32.mrf.mxu0
    %v1066 = vpop.f32.mrf.mxu0
    %v1067 = vpop.f32.mrf.mxu0
    %1068 = vdwg.mxu0
    %v1069 = vmax.f32 %v1064, 0.0
    %v1070 = vpack.c.bf16 %v1069, %v1069
    %v1071 = vld [vmem:[#allocation7] sm:$0xf]
    %v1072 = vld [vmem:[#allocation7 + $0x4] sm:$0xf]
    %v1073 = vld [vmem:[#allocation7 + $0x8] sm:$0xf]
    %v1074 = vld [vmem:[#allocation7 + $0xc] sm:$0xf]
    %v1075 = vld [vmem:[#allocation7 + $0x10] sm:$0xf]
    %v1076 = vld [vmem:[#allocation7 + $0x14] sm:$0xf]
    %v1077 = vld [vmem:[#allocation7 + $0x18] sm:$0xf]
    %v1078 = vld [vmem:[#allocation7 + $0x1c] sm:$0xf]
    %v1079 = vld [vmem:[#allocation7 + $0x20] sm:$0xf]
    %v1080 = vld [vmem:[#allocation7 + $0x24] sm:$0xf]
    %v1081 = vld [vmem:[#allocation7 + $0x28] sm:$0xf]
    %v1082 = vld [vmem:[#allocation7 + $0x2c] sm:$0xf]
    %v1083 = vld [vmem:[#allocation7 + $0x30] sm:$0xf]
    %v1084 = vld [vmem:[#allocation7 + $0x34] sm:$0xf]
    %v1085 = vld [vmem:[#allocation7 + $0x38] sm:$0xf]
    %v1086 = vld [vmem:[#allocation7 + $0x3c] sm:$0xf]
    %v1087 = vld [vmem:[%s8] sm:$0x1]
    %v1089 = vlaneseq
    %v1090 = vshrl.u32 %v1089, 7
    %v1091 = vsub.s32 0, %v1090
    %v1092 = vrot.slane %v1087, %v1091
    %v1110 = vunpack.c.l.b16 %v1071
    %v1111 = vunpack.c.l.b16 %v1072
    %v1112 = vunpack.c.l.b16 %v1073
    %v1113 = vunpack.c.l.b16 %v1074
    %v1114 = vunpack.c.l.b16 %v1075
    %v1115 = vunpack.c.l.b16 %v1076
    %v1116 = vunpack.c.l.b16 %v1077
    %v1117 = vunpack.c.l.b16 %v1078
    %v1118 = vunpack.c.l.b16 %v1079
    %v1119 = vunpack.c.l.b16 %v1080
    %v1120 = vunpack.c.l.b16 %v1081
    %v1121 = vunpack.c.l.b16 %v1082
    %v1122 = vunpack.c.l.b16 %v1083
    %v1123 = vunpack.c.l.b16 %v1084
    %v1124 = vunpack.c.l.b16 %v1085
    %v1125 = vunpack.c.l.b16 %v1086
    %v1126 = vpack.c.b16 %v1111, %v1110
    %v1127 = vpack.c.b16 %v1113, %v1112
    %v1128 = vpack.c.b16 %v1115, %v1114
    %v1129 = vpack.c.b16 %v1117, %v1116
    %v1130 = vpack.c.b16 %v1119, %v1118
    %v1131 = vpack.c.b16 %v1121, %v1120
    %v1132 = vpack.c.b16 %v1123, %v1122
    %v1133 = vpack.c.b16 %v1125, %v1124
    %1142 = vmatprep.subr.bf16.mxu0 0
    %1143 = vmatpush1.bf16.msra.mxu0 %v1133
    %1144 = vmatprep.subr.bf16.mxu0 0
    %1145 = vmatpush1.bf16.msra.mxu0 %v1132
    %1146 = vmatprep.subr.bf16.mxu0 0
    %1147 = vmatpush1.bf16.msra.mxu0 %v1131
    %1148 = vmatprep.subr.bf16.mxu0 0
    %1149 = vmatpush1.bf16.msra.mxu0 %v1130
    %1150 = vmatprep.subr.bf16.mxu0 0
    %1151 = vmatpush1.bf16.msra.mxu0 %v1129
    %1152 = vmatprep.subr.bf16.mxu0 0
    %1153 = vmatpush1.bf16.msra.mxu0 %v1128
    %1154 = vmatprep.subr.bf16.mxu0 0
    %1155 = vmatpush1.bf16.msra.mxu0 %v1127
    %1156 = vmatprep.subr.bf16.mxu0 0
    %1157 = vmatpush1.bf16.msra.mxu0 %v1126
    %1158 = vmatprep.subr.bf16.mxu0 0
    %1159 = vmatpush2.bf16.msra.mxu0 0
    %1160 = vmatprep.subr.bf16.mxu0 0
    %1161 = vmatpush2.bf16.msra.mxu0 0
    %1162 = vmatprep.subr.bf16.mxu0 0
    %1163 = vmatpush2.bf16.msra.mxu0 0
    %1164 = vmatprep.subr.bf16.mxu0 0
    %1165 = vmatpush2.bf16.msra.mxu0 0
    %1166 = vmatprep.subr.bf16.mxu0 0
    %1167 = vmatpush2.bf16.msra.mxu0 0
    %1168 = vmatprep.subr.bf16.mxu0 0
    %1169 = vmatpush2.bf16.msra.mxu0 0
    %1170 = vmatprep.subr.bf16.mxu0 0
    %1171 = vmatpush2.bf16.msra.mxu0 0
    %1172 = vmatprep.subr.bf16.mxu0 0
    %1173 = vmatpush2.bf16.msra.mxu0 0
    %1174 = vmatprep.mubr.bf16.mxu0 0
    %1175 = vmatmul.mubr.bf16.gmra.mxu0 %v1070
    %v1176 = vpop.f32.mrf.mxu0
    %v1177 = vadd.f32 %v1092, %v1176
    %v1178 = vpop.f32.mrf.mxu0
    %v1179 = vpop.f32.mrf.mxu0
    %v1180 = vpop.f32.mrf.mxu0
    %1181 = vdwg.mxu0
    %v1182 = vmax.f32 %v1177, 0.0
    %v1183 = vpack.c.bf16 %v1182, %v1182
    %v1184 = vld [vmem:[#allocation9] sm:$0xf]
    %v1185 = vld [vmem:[#allocation9 + $0x4] sm:$0xf]
    %v1186 = vld [vmem:[#allocation9 + $0x8] sm:$0xf]
    %v1187 = vld [vmem:[#allocation9 + $0xc] sm:$0xf]
    %v1188 = vld [vmem:[#allocation9 + $0x10] sm:$0xf]
    %v1189 = vld [vmem:[#allocation9 + $0x14] sm:$0xf]
    %v1190 = vld [vmem:[#allocation9 + $0x18] sm:$0xf]
    %v1191 = vld [vmem:[#allocation9 + $0x1c] sm:$0xf]
    %v1192 = vld [vmem:[#allocation9 + $0x20] sm:$0xf]
    %v1193 = vld [vmem:[#allocation9 + $0x24] sm:$0xf]
    %v1194 = vld [vmem:[#allocation9 + $0x28] sm:$0xf]
    %v1195 = vld [vmem:[#allocation9 + $0x2c] sm:$0xf]
    %v1196 = vld [vmem:[#allocation9 + $0x30] sm:$0xf]
    %v1197 = vld [vmem:[#allocation9 + $0x34] sm:$0xf]
    %v1198 = vld [vmem:[#allocation9 + $0x38] sm:$0xf]
    %v1199 = vld [vmem:[#allocation9 + $0x3c] sm:$0xf]
    %v1200 = vld [vmem:[%s10] sm:$0x1]
    %v1202 = vlaneseq
    %v1203 = vshrl.u32 %v1202, 7
    %v1204 = vsub.s32 0, %v1203
    %v1205 = vrot.slane %v1200, %v1204
    %v1223 = vunpack.c.l.b16 %v1184
    %v1224 = vunpack.c.l.b16 %v1185
    %v1225 = vunpack.c.l.b16 %v1186
    %v1226 = vunpack.c.l.b16 %v1187
    %v1227 = vunpack.c.l.b16 %v1188
    %v1228 = vunpack.c.l.b16 %v1189
    %v1229 = vunpack.c.l.b16 %v1190
    %v1230 = vunpack.c.l.b16 %v1191
    %v1231 = vunpack.c.l.b16 %v1192
    %v1232 = vunpack.c.l.b16 %v1193
    %v1233 = vunpack.c.l.b16 %v1194
    %v1234 = vunpack.c.l.b16 %v1195
    %v1235 = vunpack.c.l.b16 %v1196
    %v1236 = vunpack.c.l.b16 %v1197
    %v1237 = vunpack.c.l.b16 %v1198
    %v1238 = vunpack.c.l.b16 %v1199
    %v1239 = vpack.c.b16 %v1224, %v1223
    %v1240 = vpack.c.b16 %v1226, %v1225
    %v1241 = vpack.c.b16 %v1228, %v1227
    %v1242 = vpack.c.b16 %v1230, %v1229
    %v1243 = vpack.c.b16 %v1232, %v1231
    %v1244 = vpack.c.b16 %v1234, %v1233
    %v1245 = vpack.c.b16 %v1236, %v1235
    %v1246 = vpack.c.b16 %v1238, %v1237
    %1255 = vmatprep.subr.bf16.mxu0 0
    %1256 = vmatpush1.bf16.msra.mxu0 %v1246
    %1257 = vmatprep.subr.bf16.mxu0 0
    %1258 = vmatpush1.bf16.msra.mxu0 %v1245
    %1259 = vmatprep.subr.bf16.mxu0 0
    %1260 = vmatpush1.bf16.msra.mxu0 %v1244
    %1261 = vmatprep.subr.bf16.mxu0 0
    %1262 = vmatpush1.bf16.msra.mxu0 %v1243
    %1263 = vmatprep.subr.bf16.mxu0 0
    %1264 = vmatpush1.bf16.msra.mxu0 %v1242
    %1265 = vmatprep.subr.bf16.mxu0 0
    %1266 = vmatpush1.bf16.msra.mxu0 %v1241
    %1267 = vmatprep.subr.bf16.mxu0 0
    %1268 = vmatpush1.bf16.msra.mxu0 %v1240
    %1269 = vmatprep.subr.bf16.mxu0 0
    %1270 = vmatpush1.bf16.msra.mxu0 %v1239
    %1271 = vmatprep.subr.bf16.mxu0 0
    %1272 = vmatpush2.bf16.msra.mxu0 0
    %1273 = vmatprep.subr.bf16.mxu0 0
    %1274 = vmatpush2.bf16.msra.mxu0 0
    %1275 = vmatprep.subr.bf16.mxu0 0
    %1276 = vmatpush2.bf16.msra.mxu0 0
    %1277 = vmatprep.subr.bf16.mxu0 0
    %1278 = vmatpush2.bf16.msra.mxu0 0
    %1279 = vmatprep.subr.bf16.mxu0 0
    %1280 = vmatpush2.bf16.msra.mxu0 0
    %1281 = vmatprep.subr.bf16.mxu0 0
    %1282 = vmatpush2.bf16.msra.mxu0 0
    %1283 = vmatprep.subr.bf16.mxu0 0
    %1284 = vmatpush2.bf16.msra.mxu0 0
    %1285 = vmatprep.subr.bf16.mxu0 0
    %1286 = vmatpush2.bf16.msra.mxu0 0
    %1287 = vmatprep.mubr.bf16.mxu0 0
    %1288 = vmatmul.mubr.bf16.gmra.mxu0 %v1183
    %v1289 = vpop.f32.mrf.mxu0
    %v1290 = vadd.f32 %v1205, %v1289
    %v1291 = vpop.f32.mrf.mxu0
    %v1292 = vpop.f32.mrf.mxu0
    %v1293 = vpop.f32.mrf.mxu0
    %1294 = vdwg.mxu0
    %vm1295 = vcmask 7168
    %1296 = vst.msk [vmem:[%s11] sm:$0xff] %vm1295, %v1290
    // Predicated region
    $region66: #{hr_predictor_forward.1} parent=1 // pred_check
      _
    $region67: #{hr_predictor_forward.1} parent=1 // pred_check_branch
      %1298 = sbr.rel (0) target = $region69
    $region68: #{hr_predictor_forward.1} parent=1 // pred_region
      _
    $region69: #{hr_predictor_forward.1} parent=1 // pred_fallthru
      _
    // Predicated region
    $region70: #{hr_predictor_forward.1} parent=1 // pred_check
      _
    $region71: #{hr_predictor_forward.1} parent=1 // pred_check_branch
      %1300 = sbr.rel (0) target = $region73
    $region72: #{hr_predictor_forward.1} parent=1 // pred_region
      _
    $region73: #{hr_predictor_forward.1} parent=1 // pred_fallthru
      _
    %1301 = vsyncpa [#allocation3], 1
    %1302 = vsyncpa [#allocation5], 1
    %1303 = vsyncpa [#allocation8], 1

</llo_original>
